<compile_context>
chip_gen: v6e
topology: v6e:2x2x1
jax: 0.10.0
libtpu: 0.0.40
codegen_flags: <defaults>
</compile_context>

<pallas_src>
import jax
import jax.numpy as jnp
from jax.experimental import pallas as pl
from jax.experimental.pallas import tpu as pltpu

_LANE = 128
_SUBLANE = 8
_MIN_PALLAS_ELEMS = 1 << 15        # below this, XLA fuses the 3-line expression for free
_TARGET_TILE_ELEMS = 512 * 512     # ~1 MiB f32 per tile -> 4 MiB live with in+out double buffering


# ----------------------------- Pallas kernel ------------------------------- #
def _quant_dequant_kernel(params_ref, x_ref, o_ref):
    """clamp -> linear_quantize -> linear_dequantize, elementwise.

    params_ref: SMEM f32[5] = [clamp_min, clamp_max, scale, zero_point, 1/scale]
    x_ref / o_ref: VMEM (tm, cols) tiles in the activation's native dtype.
    """
    cmin = params_ref[0]
    cmax = params_ref[1]
    scale = params_ref[2]
    zp = params_ref[3]
    inv_scale = params_ref[4]

    x = x_ref[...].astype(jnp.float32)          # internal math in f32 (v5e VPU has no bf16)
    q = jnp.clip(x, cmin, cmax)                 # clamp(input, actual_min, actual_max)
    q = jnp.round(scale * q - zp)               # linear_quantize
    o_ref[...] = ((q + zp) * inv_scale).astype(o_ref.dtype)   # linear_dequantize (mul, not div)


# ----------------------------- wrapper helpers ------------------------------ #
def _qdq_fallback(x, cmin, cmax, scale, zp, inv_scale):
    """Plain-JAX path for small / unaligned tensors (XLA fuses this into one pass)."""
    xf = x.astype(jnp.float32)
    q = jnp.clip(xf, cmin, cmax)
    q = jnp.round(scale * q - zp)
    return ((q + zp) * inv_scale).astype(x.dtype)


def _choose_cols(n):
    """Widest lane-dense last dim whose (8, cols) granule divides n exactly (no padding)."""
    for cols in (2048, 1024, 512, 256, 128):
        if n % (cols * _SUBLANE) == 0:
            return cols
    return None


def _choose_tm(rows, cols):
    """Tile rows: multiple of 8 dividing rows, ~1 MiB f32 per tile, >= 2 grid steps if possible."""
    tm_cap = max(_SUBLANE, (_TARGET_TILE_ELEMS // cols) // _SUBLANE * _SUBLANE)
    tm_cap = min(tm_cap, rows)
    r8 = rows // _SUBLANE
    tm = _SUBLANE
    for d in range(tm_cap // _SUBLANE, 0, -1):
        if r8 % d == 0:
            tm = d * _SUBLANE
            break
    # v7x megacore: keep at least 2 'parallel' grid steps when the tensor allows it
    if rows // tm < 2 and rows >= 2 * _SUBLANE and rows % (2 * _SUBLANE) == 0:
        tm = rows // 2
    return tm


def _quantize_dequantize_pallas(x, clamp_min, clamp_max, scale, zero_point):
    orig_shape = x.shape
    n = int(x.size)

    cmin = jnp.asarray(clamp_min, jnp.float32)
    cmax = jnp.asarray(clamp_max, jnp.float32)
    sc = jnp.asarray(scale, jnp.float32)
    zp = jnp.asarray(zero_point, jnp.float32)
    inv = 1.0 / sc

    cols = _choose_cols(n)
    if n < _MIN_PALLAS_ELEMS or cols is None:
        # Small or oddly-sized tensor: a Pallas launch plus pad/slice passes would only add
        # overhead; let XLA fuse the elementwise expression.
        return _qdq_fallback(x, cmin, cmax, sc, zp, inv).reshape(orig_shape)

    rows = n // cols
    tm = _choose_tm(rows, cols)

    # Pure row-major reshape of the NCHW buffer: no copy, no pad, native dtype preserved.
    x2d = x.reshape(rows, cols)
    params = jnp.stack([cmin, cmax, sc, zp, inv])

    itemsize = x.dtype.itemsize
    out2d = pl.pallas_call(
        _quant_dequant_kernel,
        out_shape=jax.ShapeDtypeStruct((rows, cols), x.dtype),
        grid=(rows // tm,),
        in_specs=[
            pl.BlockSpec(memory_space=pltpu.MemorySpace.SMEM),     # scalar params
            pl.BlockSpec((tm, cols), lambda i: (i, 0)),             # activation tile
        ],
        out_specs=pl.BlockSpec((tm, cols), lambda i: (i, 0)),
        compiler_params=pltpu.CompilerParams(
            dimension_semantics=("parallel",)),
        cost_estimate=pl.CostEstimate(
            flops=5 * n,
            transcendentals=0,
            bytes_accessed=2 * n * itemsize),
    )(params, x2d)

    return out2d.reshape(orig_shape)


# ------------------------ plain-JAX glue / module -------------------------- #
def asymmetric_linear_quantization_params(num_bits, saturation_min, saturation_max):
    n = 2.0 ** num_bits - 1.0
    sat_min = jnp.minimum(saturation_min, jnp.zeros_like(saturation_min))
    sat_max = jnp.maximum(saturation_max, jnp.zeros_like(saturation_max))
    diff = sat_max - sat_min
    diff = jnp.where(diff == 0, n, diff)
    scale = n / diff
    zero_point = jnp.round(scale * sat_min)
    return scale, zero_point


def all_max(vec):
    # TODO(synk): torch.distributed all_gather + max across ranks; single-device world
    # (world_size == 1) makes this an identity.
    return vec


class ActivationStatisticsQuantization:
    """JAX/Pallas re-implementation of the PyTorch module (buffers kept as jnp arrays)."""

    def __init__(self, num_bits=8, percentile=0.999, get_statistics=True):
        self.get_statistics = get_statistics
        self.num_bits = jnp.array([float(num_bits)], jnp.float32)
        self.percentile = jnp.array([float(percentile)], jnp.float32)
        self.tracked_min = jnp.zeros(1, jnp.float32)
        self.tracked_min_avg = jnp.zeros(1, jnp.float32)
        self.tracked_max = jnp.zeros(1, jnp.float32)
        self.tracked_max_avg = jnp.zeros(1, jnp.float32)
        self.iter_count = jnp.zeros(1, jnp.float32)
        self.scale = jnp.ones(1, jnp.float32)
        self.zero_point = jnp.zeros(1, jnp.float32)

    def __call__(self, x):
        if float(self.num_bits[0]) == 32.0:
            return x
        elif self.get_statistics:
            # Statistics path: percentile bookkeeping on scalars, input passes through.
            p = float(self.percentile[0])
            xf = x.astype(jnp.float32)
            lo = jnp.percentile(xf, (1.0 - p) * 100.0).reshape(1)
            hi = jnp.percentile(xf, p * 100.0).reshape(1)
            self.iter_count = self.iter_count + 1.0
            vec = jnp.concatenate([lo, hi], axis=0)
            vec = all_max(vec)
            lo, hi = vec[0:1], vec[1:2]
            if float(self.iter_count[0]) == 1.0:
                # faithful to the original: scale/zero_point NOT updated on iter 1
                self.tracked_min = lo
                self.tracked_max = hi
                self.tracked_min_avg = lo
                self.tracked_max_avg = hi
            else:
                self.tracked_min = self.tracked_min + lo
                self.tracked_max = self.tracked_max + hi
                self.tracked_min_avg = self.tracked_min / self.iter_count
                self.tracked_max_avg = self.tracked_max / self.iter_count
                self.scale, self.zero_point = asymmetric_linear_quantization_params(
                    self.num_bits, self.tracked_min_avg, self.tracked_max_avg)
            return x
        else:
            # hot path: clamp + quantize + dequantize inside the Pallas kernel
            return _quantize_dequantize_pallas(
                x,
                self.tracked_min_avg[0], self.tracked_max_avg[0],
                self.scale[0], self.zero_point[0])


# --------------------------------- main ------------------------------------ #
if __name__ == "__main__":
    key = jax.random.PRNGKey(0)
    k1, k2 = jax.random.split(key)
    # NCHW conv activations; 2*32*32*32 = 65536 elements -> exercises the Pallas path
    x1 = jax.random.normal(k1, (2, 32, 32, 32), jnp.float32)
    x2 = 1.5 * jax.random.normal(k2, (2, 32, 32, 32), jnp.float32)

    mod = ActivationStatisticsQuantization(num_bits=8, percentile=0.999,
                                           get_statistics=True)
    # two statistics passes so scale / zero_point get populated (iter_count > 1)
    _ = mod(x1)
    _ = mod(x2)

    # switch to inference / quantize mode -> runs the Pallas kernel
    mod.get_statistics = False
    y = mod(x1)
    y = jax.block_until_ready(y)

    cmin = mod.tracked_min_avg[0]
    cmax = mod.tracked_max_avg[0]
    sc = mod.scale[0]
    zp = mod.zero_point[0]

    # pure-JAX reference with the original (divide) semantics
    def ref(xv):
        q = jnp.clip(xv.astype(jnp.float32), cmin, cmax)
        q = jnp.round(sc * q - zp)
        return (q + zp) / sc

    assert y.shape == x1.shape and y.dtype == x1.dtype
    assert jnp.allclose(y, ref(x1), atol=1e-5, rtol=1e-5), "Pallas kernel mismatch vs reference"

    # native-dtype I/O check (bf16 stays bf16 across the kernel, f32 math inside)
    x1_bf16 = x1.astype(jnp.bfloat16)
    y_bf16 = jax.block_until_ready(mod(x1_bf16))
    assert y_bf16.dtype == jnp.bfloat16 and y_bf16.shape == x1.shape
    assert jnp.allclose(y_bf16.astype(jnp.float32),
                        ref(x1_bf16.astype(jnp.float32)),
                        atol=2e-2, rtol=2e-2), "bf16 Pallas kernel mismatch vs reference"

    # small / unaligned tensor takes the fused-XLA fallback; semantics must match too
    xs = jax.random.normal(k1, (2, 4, 16, 16), jnp.float32)
    ys = jax.block_until_ready(mod(xs))
    assert ys.shape == xs.shape and ys.dtype == xs.dtype
    assert jnp.allclose(ys, ref(xs), atol=1e-5, rtol=1e-5), "fallback path mismatch vs reference"

    print("KERNEL_OK")
</pallas_src>

<mosaic_0001>
module attributes {stable_mosaic.version = 11 : i64} {
  func.func @_quant_dequant_kernel(%arg0: i32, %arg1: memref<5xf32, #tpu.memory_space<smem>>, %arg2: memref<16x2048xf32, #tpu.memory_space<vmem>>, %arg3: memref<16x2048xf32, #tpu.memory_space<vmem>>) attributes {dimension_semantics = [#tpu.dimension_semantics<parallel>], iteration_bounds = array<i64: 2>, scalar_prefetch = 0 : i64, scratch_operands = 0 : i64, tpu.core_type = #tpu.core_type<tc>, window_params = [{transform_indices = @transform_0, window_bounds = array<i64: 5>}, {transform_indices = @transform_1, window_bounds = array<i64: 16, 2048>}, {transform_indices = @transform_2, window_bounds = array<i64: 16, 2048>}]} {
    %c0 = arith.constant 0 : index
    %0 = memref.load %arg1[%c0] : memref<5xf32, #tpu.memory_space<smem>>
    %c1 = arith.constant 1 : index
    %1 = memref.load %arg1[%c1] : memref<5xf32, #tpu.memory_space<smem>>
    %c2 = arith.constant 2 : index
    %2 = memref.load %arg1[%c2] : memref<5xf32, #tpu.memory_space<smem>>
    %c3 = arith.constant 3 : index
    %3 = memref.load %arg1[%c3] : memref<5xf32, #tpu.memory_space<smem>>
    %c4 = arith.constant 4 : index
    %4 = memref.load %arg1[%c4] : memref<5xf32, #tpu.memory_space<smem>>
    %c0_0 = arith.constant 0 : index
    %c0_1 = arith.constant 0 : index
    %5 = vector.load %arg2[%c0_0, %c0_1] : memref<16x2048xf32, #tpu.memory_space<vmem>>, vector<16x2048xf32>
    %6 = vector.broadcast %0 : f32 to vector<16x2048xf32>
    %7 = arith.maximumf %6, %5 : vector<16x2048xf32>
    %8 = vector.broadcast %1 : f32 to vector<16x2048xf32>
    %9 = arith.minimumf %8, %7 : vector<16x2048xf32>
    %10 = vector.broadcast %2 : f32 to vector<16x2048xf32>
    %11 = arith.mulf %10, %9 : vector<16x2048xf32>
    %12 = vector.broadcast %3 : f32 to vector<16x2048xf32>
    %13 = arith.subf %11, %12 : vector<16x2048xf32>
    %14 = math.roundeven %13 : vector<16x2048xf32>
    %15 = vector.broadcast %3 : f32 to vector<16x2048xf32>
    %16 = arith.addf %14, %15 : vector<16x2048xf32>
    %17 = vector.broadcast %4 : f32 to vector<16x2048xf32>
    %18 = arith.mulf %16, %17 : vector<16x2048xf32>
    %c0_2 = arith.constant 0 : index
    %c0_3 = arith.constant 0 : index
    %19 = vector.load %arg3[%c0_2, %c0_3] : memref<16x2048xf32, #tpu.memory_space<vmem>>, vector<16x2048xf32>
    tpu.vector_store %arg3[%c0_2, %c0_3], %18 {strides = array<i32>} : memref<16x2048xf32, #tpu.memory_space<vmem>>, vector<16x2048xf32>,
    return
  }
  func.func @transform_0(%arg0: i32) -> i32 {
    %c0_i32 = arith.constant 0 : i32
    %c0_i32_0 = arith.constant 0 : i32
    return %c0_i32 : i32
  }
  func.func @transform_1(%arg0: i32) -> (i32, i32) {
    %c0_i32 = arith.constant 0 : i32
    %c0_i32_0 = arith.constant 0 : i32
    return %arg0, %c0_i32 : i32, i32
  }
  func.func @transform_2(%arg0: i32) -> (i32, i32) {
    %c0_i32 = arith.constant 0 : i32
    %c0_i32_0 = arith.constant 0 : i32
    return %arg0, %c0_i32 : i32, i32
  }
}

</mosaic_0001>

<llo_original>
// kernel: tpu_custom_call.1
$region0: #{tpu_custom_call.1}
  #allocation0 [shape = 'u32[]', space=smem, size = 0x4, offset = 0x4, fixed_abs, tag = 'smem constant byte address 0x4 - core index']
  #allocation1 [shape = 'u32[144,128]{1,0:T(1,128)}', space=vmem, size = 0x12000, scoped, tag = 'internal scratch']
  %s0 = inlined_call_operand.hbm [shape: f32[5], index: 0, kind: input, shape index: {}]
  %s1 = inlined_call_operand.hbm [shape: f32[32,2048], index: 1, kind: input, shape index: {}]
  %s2 = inlined_call_operand.hbm [shape: f32[32,2048], index: 2, kind: output, shape index: {}]
  %s3 = sld [smem:[#allocation0]]
  $region49: #{tpu_custom_call.1} parent=0
    _
  %s5 = ssub.s32 1, %s3
  %s6 = scalar_select 0, %s5, %s3
  $region1: #{tpu_custom_call.1} parent=0
    #allocation2 [shape = 'u8[512]{0}', space=smem, size = 0x200, scoped, tag = 'input window, operand 0, single buffered']
    #allocation3 [shape = 's32[2]{0}', space=sflag, size = 0x8, scoped, tag = 'scoped memory for tpu_custom_call.1']
    #allocation4 [shape = 's32[2]{0}', space=sflag, size = 0x8, scoped, tag = 'scoped memory for tpu_custom_call.1']
    #allocation5 [shape = 's32[2]{0}', space=sflag, size = 0x8, scoped, tag = 'scoped memory for tpu_custom_call.1']
    #allocation6 [shape = 'u8[262144]{0}', space=vmem, size = 0x40000, scoped, tag = 'input window, operand 1']
    #allocation7 [shape = 'u8[262144]{0}', space=vmem, size = 0x40000, scoped, tag = 'output window, operand 0']
    %7 = vsyncpa [#allocation5], 0
    %8 = vsyncpa [#allocation3], 0
    %s9 = scalar_lea.sflag [#allocation3], 1
    %10 = vsyncpa %s9, 0
    %11 = vsyncpa [#allocation4], 0
    %s12 = scalar_lea.sflag [#allocation4], 1
    %13 = vsyncpa %s12, 0
    loop: start=0, step=1, limit=4
    $region2: #{tpu_custom_call.1} parent=1 // loop_pre_header
      _
    $region3: #{tpu_custom_call.1} parent=1 // loop_header
      %s15 = sphi 0, %s19
      %p16 = scmp.ge.s32.totalorder %s15, 4
      %s23 = sphi 0, %s23
      %s25 = sphi 0, %s23
      %s26 = sphi 0, %s25
      %s40 = sphi 0, %s26
      %s46 = sphi 0, %s48
      %s49 = sphi 0, %s46
      %s50 = sphi 0, %s49
      %s66 = sphi 0, %s50
      %s72 = sphi 0, %s74
      %s75 = sphi 0, %s72
      %s76 = sphi 0, %s75
      %s92 = sphi 0, %s76
    $region4: #{tpu_custom_call.1} parent=1 // loop_header_branch
      %18 = sbr.rel (%p16) target = $region8
    $region5: #{tpu_custom_call.1} parent=1 // loop_body
      %s20 = ssub.s32 %s15, 1
      %s21 = ssub.s32 %s15, 2
      %s22 = sadd.s32 %s15, 1
      %s24 = sadd.s32 %s23, 1
      %p27 = scmp.eq.s32.totalorder %s15, 1
      %p28 = scmp.ne.s32.totalorder %s23, %s25
      %p29 = scmp.eq.s32.totalorder %s15, 0
      %p30 = por %p28, %p29
      %p31 = scmp.ne.s32.totalorder %s23, %s25
      %p32 = scmp.eq.s32.totalorder %s20, 1
      %p33 = por %p31, %p32
      %p34 = scmp.ne.s32.totalorder %s25, %s26
      %p35 = scmp.eq.s32.totalorder %s20, 0
      %p36 = por %p34, %p35
      %p37 = scmp.ne.s32.totalorder %s25, %s26
      %p38 = scmp.eq.s32.totalorder %s21, 1
      %p39 = por %p37, %p38
      %p41 = scmp.ne.s32.totalorder %s26, %s40
      %p42 = scmp.eq.s32.totalorder %s21, 0
      %p43 = por %p41, %p42
      %s44 = ssub.s32 %s15, %s22
      %p45 = scmp.eq.s32.totalorder %s44, 0
      %s47 = sadd.s32 %s46, 1
      %s48 = scalar_select %p45, %s46, %s47
      %p51 = pneg %p45
      %p52 = scmp.eq.s32.totalorder %s15, 1
      %p53 = por %p51, %p52
      %p54 = scmp.ne.s32.totalorder %s46, %s49
      %p55 = scmp.eq.s32.totalorder %s15, 0
      %p56 = por %p54, %p55
      %p57 = scmp.ne.s32.totalorder %s46, %s49
      %p58 = scmp.eq.s32.totalorder %s20, 1
      %p59 = por %p57, %p58
      %p60 = scmp.ne.s32.totalorder %s49, %s50
      %p61 = scmp.eq.s32.totalorder %s20, 0
      %p62 = por %p60, %p61
      %p63 = scmp.ne.s32.totalorder %s49, %s50
      %p64 = scmp.eq.s32.totalorder %s21, 1
      %p65 = por %p63, %p64
      %p67 = scmp.ne.s32.totalorder %s50, %s66
      %p68 = scmp.eq.s32.totalorder %s21, 0
      %p69 = por %p67, %p68
      %s70 = ssub.s32 %s15, %s22
      %p71 = scmp.eq.s32.totalorder %s70, 0
      %s73 = sadd.s32 %s72, 1
      %s74 = scalar_select %p71, %s72, %s73
      %p77 = pneg %p71
      %p78 = scmp.eq.s32.totalorder %s15, 1
      %p79 = por %p77, %p78
      %p80 = scmp.ne.s32.totalorder %s72, %s75
      %p81 = scmp.eq.s32.totalorder %s15, 0
      %p82 = por %p80, %p81
      %p83 = scmp.ne.s32.totalorder %s72, %s75
      %p84 = scmp.eq.s32.totalorder %s20, 1
      %p85 = por %p83, %p84
      %p86 = scmp.ne.s32.totalorder %s75, %s76
      %p87 = scmp.eq.s32.totalorder %s20, 0
      %p88 = por %p86, %p87
      %p89 = scmp.ne.s32.totalorder %s75, %s76
      %p90 = scmp.eq.s32.totalorder %s21, 1
      %p91 = por %p89, %p90
      %p93 = scmp.ne.s32.totalorder %s76, %s92
      %p94 = scmp.eq.s32.totalorder %s21, 0
      %p95 = por %p93, %p94
      %p96 = scmp.le.s32.totalorder 1, %s15
      %p97 = scmp.lt.s32.totalorder %s15, 3
      %p98 = pnand %p96, %p97
      %p99 = pneg %p98
      // Predicated region
      $region9: #{tpu_custom_call.1} parent=5 // pred_check
        _
      $region10: #{tpu_custom_call.1} parent=5 // pred_check_branch
        %101 = sbr.rel (%p98) target = $region12
      $region11: #{tpu_custom_call.1} parent=5 // pred_region
        %s102 = ssub.s32 %s15, 1
        // Predicated region
        $region13: #{tpu_custom_call.1} parent=11 // pred_check
          %p103 = pneg %p36
        $region14: #{tpu_custom_call.1} parent=11 // pred_check_branch
          %105 = sbr.rel (%p103) target = $region16
        $region15: #{tpu_custom_call.1} parent=11 // pred_region
          %s107 = ssub.s32 16, 16
          %108 = vsyncadd [#allocation5], %s107
          %111 = dma.hbm_to_smem %s0, 16, [#allocation2], [#allocation5]
        $region16: #{tpu_custom_call.1} parent=11 // pred_fallthru
          _
      $region12: #{tpu_custom_call.1} parent=5 // pred_fallthru
        _
      %p112 = scmp.lt.s32.totalorder %s15, 2
      // Predicated region
      $region17: #{tpu_custom_call.1} parent=5 // pred_check
        %p113 = pneg %p112
      $region18: #{tpu_custom_call.1} parent=5 // pred_check_branch
        %115 = sbr.rel (%p113) target = $region20
      $region19: #{tpu_custom_call.1} parent=5 // pred_region
        // Predicated region
        $region21: #{tpu_custom_call.1} parent=19 // pred_check
          %p116 = pneg %p56
        $region22: #{tpu_custom_call.1} parent=19 // pred_check_branch
          %118 = sbr.rel (%p116) target = $region24
        $region23: #{tpu_custom_call.1} parent=19 // pred_region
          %s119 = sand.u32 %s46, 1
          %s120 = scalar_lea.sflag [#allocation3], %s119
          %s121 = sand.u32 %s46, 1
          %s122 = smul.addr %s121, 256
          %s123 = scalar_lea.vmem [#allocation6], %s122
          %s124 = smul.u32 2, %s15
          %s126 = ssub.s32 4096, 4096
          %127 = vsyncadd %s120, %s126
          %s128 = smul.addr %s124, 16
          %s129 = smul.addr %s128, 128
          %s130 = scalar_lea.hbm %s1, %s129
          %s131 = sshll.u32 %s123, 4
          %s132 = int_to_ptr.vmem [resolvable:$true] %s131
          %137 = dma.hbm_to_vmem [thread:$0]  %s130, 4096, %s132, %s120, 2048, 2048, 128
        $region24: #{tpu_custom_call.1} parent=19 // pred_fallthru
          _
      $region20: #{tpu_custom_call.1} parent=5 // pred_fallthru
        _
      %p138 = scmp.le.s32.totalorder 1, %s15
      %p139 = scmp.lt.s32.totalorder %s15, 3
      %p140 = pnand %p138, %p139
      %p141 = pneg %p140
      // Predicated region
      $region25: #{tpu_custom_call.1} parent=5 // pred_check
        _
      $region26: #{tpu_custom_call.1} parent=5 // pred_check_branch
        %143 = sbr.rel (%p140) target = $region28
      $region27: #{tpu_custom_call.1} parent=5 // pred_region
        %s144 = ssub.s32 %s15, 1
        // Predicated region
        $region29: #{tpu_custom_call.1} parent=27 // pred_check
          %p145 = pneg %p36
        $region30: #{tpu_custom_call.1} parent=27 // pred_check_branch
          %147 = sbr.rel (%p145) target = $region32
        $region31: #{tpu_custom_call.1} parent=27 // pred_region
          %148 = dma.done [#allocation5], 16
        $region32: #{tpu_custom_call.1} parent=27 // pred_fallthru
          _
        %s149 = sand.u32 %s49, 1
        %s150 = scalar_lea.sflag [#allocation3], %s149
        %s151 = sand.u32 %s49, 1
        %s152 = smul.addr %s151, 256
        %s153 = scalar_lea.vmem [#allocation6], %s152
        // Predicated region
        $region33: #{tpu_custom_call.1} parent=27 // pred_check
          %p154 = pneg %p62
        $region34: #{tpu_custom_call.1} parent=27 // pred_check_branch
          %156 = sbr.rel (%p154) target = $region36
        $region35: #{tpu_custom_call.1} parent=27 // pred_region
          %157 = dma.done %s150, 4096
        $region36: #{tpu_custom_call.1} parent=27 // pred_fallthru
          _
        %158 = sfence
        %p159 = pneg %p36
        %p160 = pneg %p33
        %s161 = sand.u32 %s49, 1
        %s162 = scalar_lea.sflag [#allocation3], %s161
        %s163 = sand.u32 %s49, 1
        %s164 = smul.addr %s163, 256
        %s165 = scalar_lea.vmem [#allocation6], %s164
        %p166 = pneg %p62
        %p167 = pneg %p59
        %p168 = pneg %p88
        %p169 = pneg %p85
        %s170 = sand.u32 %s75, 1
        %s171 = scalar_lea.sflag [#allocation4], %s170
        %s172 = sand.u32 %s75, 1
        %s173 = smul.addr %s172, 256
        %s174 = scalar_lea.vmem [#allocation7], %s173
        %s175 = smul.u32 2, %s20
        %s176 = smul.u32 2, %s20
        %s177 = sld [smem:[#allocation2]]
        %s178 = sld [smem:[#allocation2 + $0x1]]
        %s179 = sld [smem:[#allocation2 + $0x2]]
        %s180 = sld [smem:[#allocation2 + $0x3]]
        %s181 = sld [smem:[#allocation2 + $0x4]]
        %v182 = vld [vmem:[%s153] sm:$0xff]
        %v183 = vld [vmem:[%s153 + $0x8] sm:$0xff]
        %v184 = vld [vmem:[%s153 + $0x10] sm:$0xff]
        %v185 = vld [vmem:[%s153 + $0x18] sm:$0xff]
        %v186 = vld [vmem:[%s153 + $0x20] sm:$0xff]
        %v187 = vld [vmem:[%s153 + $0x28] sm:$0xff]
        %v188 = vld [vmem:[%s153 + $0x30] sm:$0xff]
        %v189 = vld [vmem:[%s153 + $0x38] sm:$0xff]
        %v190 = vld [vmem:[%s153 + $0x40] sm:$0xff]
        %v191 = vld [vmem:[%s153 + $0x48] sm:$0xff]
        %v192 = vld [vmem:[%s153 + $0x50] sm:$0xff]
        %v193 = vld [vmem:[%s153 + $0x58] sm:$0xff]
        %v194 = vld [vmem:[%s153 + $0x60] sm:$0xff]
        %v195 = vld [vmem:[%s153 + $0x68] sm:$0xff]
        %v196 = vld [vmem:[%s153 + $0x70] sm:$0xff]
        %v197 = vld [vmem:[%s153 + $0x78] sm:$0xff]
        %v198 = vld [vmem:[%s153 + $0x80] sm:$0xff]
        %v199 = vld [vmem:[%s153 + $0x88] sm:$0xff]
        %v200 = vld [vmem:[%s153 + $0x90] sm:$0xff]
        %v201 = vld [vmem:[%s153 + $0x98] sm:$0xff]
        %v202 = vld [vmem:[%s153 + $0xa0] sm:$0xff]
        %v203 = vld [vmem:[%s153 + $0xa8] sm:$0xff]
        %v204 = vld [vmem:[%s153 + $0xb0] sm:$0xff]
        %v205 = vld [vmem:[%s153 + $0xb8] sm:$0xff]
        %v206 = vld [vmem:[%s153 + $0xc0] sm:$0xff]
        %v207 = vld [vmem:[%s153 + $0xc8] sm:$0xff]
        %v208 = vld [vmem:[%s153 + $0xd0] sm:$0xff]
        %v209 = vld [vmem:[%s153 + $0xd8] sm:$0xff]
        %v210 = vld [vmem:[%s153 + $0xe0] sm:$0xff]
        %v211 = vld [vmem:[%s153 + $0xe8] sm:$0xff]
        %v212 = vld [vmem:[%s153 + $0xf0] sm:$0xff]
        %v213 = vld [vmem:[%s153 + $0xf8] sm:$0xff]
        %v214 = vstv %s177
        %v215 = vmax.f32 %v214, %v182
        %v216 = vmax.f32 %v214, %v183
        %v217 = vmax.f32 %v214, %v184
        %v218 = vmax.f32 %v214, %v185
        %v219 = vmax.f32 %v214, %v186
        %v220 = vmax.f32 %v214, %v187
        %v221 = vmax.f32 %v214, %v188
        %v222 = vmax.f32 %v214, %v189
        %v223 = vmax.f32 %v214, %v190
        %v224 = vmax.f32 %v214, %v191
        %v225 = vmax.f32 %v214, %v192
        %v226 = vmax.f32 %v214, %v193
        %v227 = vmax.f32 %v214, %v194
        %v228 = vmax.f32 %v214, %v195
        %v229 = vmax.f32 %v214, %v196
        %v230 = vmax.f32 %v214, %v197
        %v231 = vmax.f32 %v214, %v198
        %v232 = vmax.f32 %v214, %v199
        %v233 = vmax.f32 %v214, %v200
        %v234 = vmax.f32 %v214, %v201
        %v235 = vmax.f32 %v214, %v202
        %v236 = vmax.f32 %v214, %v203
        %v237 = vmax.f32 %v214, %v204
        %v238 = vmax.f32 %v214, %v205
        %v239 = vmax.f32 %v214, %v206
        %v240 = vmax.f32 %v214, %v207
        %v241 = vmax.f32 %v214, %v208
        %v242 = vmax.f32 %v214, %v209
        %v243 = vmax.f32 %v214, %v210
        %v244 = vmax.f32 %v214, %v211
        %v245 = vmax.f32 %v214, %v212
        %v246 = vmax.f32 %v214, %v213
        %v247 = vstv %s178
        %v248 = vmin.f32 %v247, %v215
        %v249 = vmin.f32 %v247, %v216
        %v250 = vmin.f32 %v247, %v217
        %v251 = vmin.f32 %v247, %v218
        %v252 = vmin.f32 %v247, %v219
        %v253 = vmin.f32 %v247, %v220
        %v254 = vmin.f32 %v247, %v221
        %v255 = vmin.f32 %v247, %v222
        %v256 = vmin.f32 %v247, %v223
        %v257 = vmin.f32 %v247, %v224
        %v258 = vmin.f32 %v247, %v225
        %v259 = vmin.f32 %v247, %v226
        %v260 = vmin.f32 %v247, %v227
        %v261 = vmin.f32 %v247, %v228
        %v262 = vmin.f32 %v247, %v229
        %v263 = vmin.f32 %v247, %v230
        %v264 = vmin.f32 %v247, %v231
        %v265 = vmin.f32 %v247, %v232
        %v266 = vmin.f32 %v247, %v233
        %v267 = vmin.f32 %v247, %v234
        %v268 = vmin.f32 %v247, %v235
        %v269 = vmin.f32 %v247, %v236
        %v270 = vmin.f32 %v247, %v237
        %v271 = vmin.f32 %v247, %v238
        %v272 = vmin.f32 %v247, %v239
        %v273 = vmin.f32 %v247, %v240
        %v274 = vmin.f32 %v247, %v241
        %v275 = vmin.f32 %v247, %v242
        %v276 = vmin.f32 %v247, %v243
        %v277 = vmin.f32 %v247, %v244
        %v278 = vmin.f32 %v247, %v245
        %v279 = vmin.f32 %v247, %v246
        %v280 = vstv %s179
        %v281 = vmul.f32 %v280, %v248
        %v282 = vmul.f32 %v280, %v249
        %v283 = vmul.f32 %v280, %v250
        %v284 = vmul.f32 %v280, %v251
        %v285 = vmul.f32 %v280, %v252
        %v286 = vmul.f32 %v280, %v253
        %v287 = vmul.f32 %v280, %v254
        %v288 = vmul.f32 %v280, %v255
        %v289 = vmul.f32 %v280, %v256
        %v290 = vmul.f32 %v280, %v257
        %v291 = vmul.f32 %v280, %v258
        %v292 = vmul.f32 %v280, %v259
        %v293 = vmul.f32 %v280, %v260
        %v294 = vmul.f32 %v280, %v261
        %v295 = vmul.f32 %v280, %v262
        %v296 = vmul.f32 %v280, %v263
        %v297 = vmul.f32 %v280, %v264
        %v298 = vmul.f32 %v280, %v265
        %v299 = vmul.f32 %v280, %v266
        %v300 = vmul.f32 %v280, %v267
        %v301 = vmul.f32 %v280, %v268
        %v302 = vmul.f32 %v280, %v269
        %v303 = vmul.f32 %v280, %v270
        %v304 = vmul.f32 %v280, %v271
        %v305 = vmul.f32 %v280, %v272
        %v306 = vmul.f32 %v280, %v273
        %v307 = vmul.f32 %v280, %v274
        %v308 = vmul.f32 %v280, %v275
        %v309 = vmul.f32 %v280, %v276
        %v310 = vmul.f32 %v280, %v277
        %v311 = vmul.f32 %v280, %v278
        %v312 = vmul.f32 %v280, %v279
        %v313 = vstv %s180
        %v314 = vsub.f32 %v281, %v313
        %v315 = vsub.f32 %v282, %v313
        %v316 = vsub.f32 %v283, %v313
        %v317 = vsub.f32 %v284, %v313
        %v318 = vsub.f32 %v285, %v313
        %v319 = vsub.f32 %v286, %v313
        %v320 = vsub.f32 %v287, %v313
        %v321 = vsub.f32 %v288, %v313
        %v322 = vsub.f32 %v289, %v313
        %v323 = vsub.f32 %v290, %v313
        %v324 = vsub.f32 %v291, %v313
        %v325 = vsub.f32 %v292, %v313
        %v326 = vsub.f32 %v293, %v313
        %v327 = vsub.f32 %v294, %v313
        %v328 = vsub.f32 %v295, %v313
        %v329 = vsub.f32 %v296, %v313
        %v330 = vsub.f32 %v297, %v313
        %v331 = vsub.f32 %v298, %v313
        %v332 = vsub.f32 %v299, %v313
        %v333 = vsub.f32 %v300, %v313
        %v334 = vsub.f32 %v301, %v313
        %v335 = vsub.f32 %v302, %v313
        %v336 = vsub.f32 %v303, %v313
        %v337 = vsub.f32 %v304, %v313
        %v338 = vsub.f32 %v305, %v313
        %v339 = vsub.f32 %v306, %v313
        %v340 = vsub.f32 %v307, %v313
        %v341 = vsub.f32 %v308, %v313
        %v342 = vsub.f32 %v309, %v313
        %v343 = vsub.f32 %v310, %v313
        %v344 = vsub.f32 %v311, %v313
        %v345 = vsub.f32 %v312, %v313
        %v346 = vround.ne.pseudo %v314
        %v347 = vround.ne.pseudo %v315
        %v348 = vround.ne.pseudo %v316
        %v349 = vround.ne.pseudo %v317
        %v350 = vround.ne.pseudo %v318
        %v351 = vround.ne.pseudo %v319
        %v352 = vround.ne.pseudo %v320
        %v353 = vround.ne.pseudo %v321
        %v354 = vround.ne.pseudo %v322
        %v355 = vround.ne.pseudo %v323
        %v356 = vround.ne.pseudo %v324
        %v357 = vround.ne.pseudo %v325
        %v358 = vround.ne.pseudo %v326
        %v359 = vround.ne.pseudo %v327
        %v360 = vround.ne.pseudo %v328
        %v361 = vround.ne.pseudo %v329
        %v362 = vround.ne.pseudo %v330
        %v363 = vround.ne.pseudo %v331
        %v364 = vround.ne.pseudo %v332
        %v365 = vround.ne.pseudo %v333
        %v366 = vround.ne.pseudo %v334
        %v367 = vround.ne.pseudo %v335
        %v368 = vround.ne.pseudo %v336
        %v369 = vround.ne.pseudo %v337
        %v370 = vround.ne.pseudo %v338
        %v371 = vround.ne.pseudo %v339
        %v372 = vround.ne.pseudo %v340
        %v373 = vround.ne.pseudo %v341
        %v374 = vround.ne.pseudo %v342
        %v375 = vround.ne.pseudo %v343
        %v376 = vround.ne.pseudo %v344
        %v377 = vround.ne.pseudo %v345
        %v378 = vadd.f32 %v346, %v313
        %v379 = vadd.f32 %v347, %v313
        %v380 = vadd.f32 %v348, %v313
        %v381 = vadd.f32 %v349, %v313
        %v382 = vadd.f32 %v350, %v313
        %v383 = vadd.f32 %v351, %v313
        %v384 = vadd.f32 %v352, %v313
        %v385 = vadd.f32 %v353, %v313
        %v386 = vadd.f32 %v354, %v313
        %v387 = vadd.f32 %v355, %v313
        %v388 = vadd.f32 %v356, %v313
        %v389 = vadd.f32 %v357, %v313
        %v390 = vadd.f32 %v358, %v313
        %v391 = vadd.f32 %v359, %v313
        %v392 = vadd.f32 %v360, %v313
        %v393 = vadd.f32 %v361, %v313
        %v394 = vadd.f32 %v362, %v313
        %v395 = vadd.f32 %v363, %v313
        %v396 = vadd.f32 %v364, %v313
        %v397 = vadd.f32 %v365, %v313
        %v398 = vadd.f32 %v366, %v313
        %v399 = vadd.f32 %v367, %v313
        %v400 = vadd.f32 %v368, %v313
        %v401 = vadd.f32 %v369, %v313
        %v402 = vadd.f32 %v370, %v313
        %v403 = vadd.f32 %v371, %v313
        %v404 = vadd.f32 %v372, %v313
        %v405 = vadd.f32 %v373, %v313
        %v406 = vadd.f32 %v374, %v313
        %v407 = vadd.f32 %v375, %v313
        %v408 = vadd.f32 %v376, %v313
        %v409 = vadd.f32 %v377, %v313
        %v410 = vstv %s181
        %v411 = vmul.f32 %v378, %v410
        %v412 = vmul.f32 %v379, %v410
        %v413 = vmul.f32 %v380, %v410
        %v414 = vmul.f32 %v381, %v410
        %v415 = vmul.f32 %v382, %v410
        %v416 = vmul.f32 %v383, %v410
        %v417 = vmul.f32 %v384, %v410
        %v418 = vmul.f32 %v385, %v410
        %v419 = vmul.f32 %v386, %v410
        %v420 = vmul.f32 %v387, %v410
        %v421 = vmul.f32 %v388, %v410
        %v422 = vmul.f32 %v389, %v410
        %v423 = vmul.f32 %v390, %v410
        %v424 = vmul.f32 %v391, %v410
        %v425 = vmul.f32 %v392, %v410
        %v426 = vmul.f32 %v393, %v410
        %v427 = vmul.f32 %v394, %v410
        %v428 = vmul.f32 %v395, %v410
        %v429 = vmul.f32 %v396, %v410
        %v430 = vmul.f32 %v397, %v410
        %v431 = vmul.f32 %v398, %v410
        %v432 = vmul.f32 %v399, %v410
        %v433 = vmul.f32 %v400, %v410
        %v434 = vmul.f32 %v401, %v410
        %v435 = vmul.f32 %v402, %v410
        %v436 = vmul.f32 %v403, %v410
        %v437 = vmul.f32 %v404, %v410
        %v438 = vmul.f32 %v405, %v410
        %v439 = vmul.f32 %v406, %v410
        %v440 = vmul.f32 %v407, %v410
        %v441 = vmul.f32 %v408, %v410
        %v442 = vmul.f32 %v409, %v410
        %443 = vst [vmem:[%s174] sm:$0xff] %v411
        %444 = vst [vmem:[%s174 + $0x8] sm:$0xff] %v412
        %445 = vst [vmem:[%s174 + $0x10] sm:$0xff] %v413
        %446 = vst [vmem:[%s174 + $0x18] sm:$0xff] %v414
        %447 = vst [vmem:[%s174 + $0x20] sm:$0xff] %v415
        %448 = vst [vmem:[%s174 + $0x28] sm:$0xff] %v416
        %449 = vst [vmem:[%s174 + $0x30] sm:$0xff] %v417
        %450 = vst [vmem:[%s174 + $0x38] sm:$0xff] %v418
        %451 = vst [vmem:[%s174 + $0x40] sm:$0xff] %v419
        %452 = vst [vmem:[%s174 + $0x48] sm:$0xff] %v420
        %453 = vst [vmem:[%s174 + $0x50] sm:$0xff] %v421
        %454 = vst [vmem:[%s174 + $0x58] sm:$0xff] %v422
        %455 = vst [vmem:[%s174 + $0x60] sm:$0xff] %v423
        %456 = vst [vmem:[%s174 + $0x68] sm:$0xff] %v424
        %457 = vst [vmem:[%s174 + $0x70] sm:$0xff] %v425
        %458 = vst [vmem:[%s174 + $0x78] sm:$0xff] %v426
        %459 = vst [vmem:[%s174 + $0x80] sm:$0xff] %v427
        %460 = vst [vmem:[%s174 + $0x88] sm:$0xff] %v428
        %461 = vst [vmem:[%s174 + $0x90] sm:$0xff] %v429
        %462 = vst [vmem:[%s174 + $0x98] sm:$0xff] %v430
        %463 = vst [vmem:[%s174 + $0xa0] sm:$0xff] %v431
        %464 = vst [vmem:[%s174 + $0xa8] sm:$0xff] %v432
        %465 = vst [vmem:[%s174 + $0xb0] sm:$0xff] %v433
        %466 = vst [vmem:[%s174 + $0xb8] sm:$0xff] %v434
        %467 = vst [vmem:[%s174 + $0xc0] sm:$0xff] %v435
        %468 = vst [vmem:[%s174 + $0xc8] sm:$0xff] %v436
        %469 = vst [vmem:[%s174 + $0xd0] sm:$0xff] %v437
        %470 = vst [vmem:[%s174 + $0xd8] sm:$0xff] %v438
        %471 = vst [vmem:[%s174 + $0xe0] sm:$0xff] %v439
        %472 = vst [vmem:[%s174 + $0xe8] sm:$0xff] %v440
        %473 = vst [vmem:[%s174 + $0xf0] sm:$0xff] %v441
        %474 = vst [vmem:[%s174 + $0xf8] sm:$0xff] %v442
        %s475 = sand.u32 %s75, 1
        %s476 = scalar_lea.sflag [#allocation4], %s475
        %s477 = sand.u32 %s75, 1
        %s478 = smul.addr %s477, 256
        %s479 = scalar_lea.vmem [#allocation7], %s478
        // Predicated region
        $region37: #{tpu_custom_call.1} parent=27 // pred_check
          %p480 = pneg %p85
        $region38: #{tpu_custom_call.1} parent=27 // pred_check_branch
          %482 = sbr.rel (%p480) target = $region40
        $region39: #{tpu_custom_call.1} parent=27 // pred_region
          %s483 = smul.u32 2, %s20
          %s485 = ssub.s32 4096, 4096
          %486 = vsyncadd %s476, %s485
          %s487 = smul.addr %s483, 16
          %s488 = smul.addr %s487, 128
          %s489 = scalar_lea.hbm %s2, %s488
          %s490 = sshll.u32 %s479, 4
          %s491 = int_to_ptr.vmem [resolvable:$true] %s490
          %496 = dma.vmem_to_hbm [thread:$0]  %s491, 4096, %s489, %s476, 2048, 2048, 128
        $region40: #{tpu_custom_call.1} parent=27 // pred_fallthru
          _
      $region28: #{tpu_custom_call.1} parent=5 // pred_fallthru
        _
      %p497 = scmp.le.s32.totalorder 2, %s15
      // Predicated region
      $region41: #{tpu_custom_call.1} parent=5 // pred_check
        %p498 = pneg %p497
      $region42: #{tpu_custom_call.1} parent=5 // pred_check_branch
        %500 = sbr.rel (%p498) target = $region44
      $region43: #{tpu_custom_call.1} parent=5 // pred_region
        %s501 = ssub.s32 %s15, 2
        // Predicated region
        $region45: #{tpu_custom_call.1} parent=43 // pred_check
          %p502 = pneg %p91
        $region46: #{tpu_custom_call.1} parent=43 // pred_check_branch
          %504 = sbr.rel (%p502) target = $region48
        $region47: #{tpu_custom_call.1} parent=43 // pred_region
          %s505 = sand.u32 %s76, 1
          %s506 = scalar_lea.sflag [#allocation4], %s505
          %s507 = sand.u32 %s76, 1
          %s508 = smul.addr %s507, 256
          %s509 = scalar_lea.vmem [#allocation7], %s508
          %510 = dma.done %s506, 4096
        $region48: #{tpu_custom_call.1} parent=43 // pred_fallthru
          _
      $region44: #{tpu_custom_call.1} parent=5 // pred_fallthru
        _
    $region6: #{tpu_custom_call.1} parent=1 // loop_footer
      %s19 = sadd.s32 1, %s15
    $region7: #{tpu_custom_call.1} parent=1 // loop_footer_branch
      %14 = sbr.rel target = $region3
    $region8: #{tpu_custom_call.1} parent=1 // loop_exit
      _
    %511 = vsyncpa [#allocation3], 1
    %s512 = scalar_lea.sflag [#allocation3], 1
    %513 = vsyncpa %s512, 1
    %514 = vsyncpa [#allocation4], 1
    %s515 = scalar_lea.sflag [#allocation4], 1
    %516 = vsyncpa %s515, 1
    %517 = vsyncpa [#allocation5], 1
    %s518 = scalar_lea.sflag [#allocation5], 1
    %519 = vsyncpa %s518, 1

</llo_original>
